<compile_context>
chip_gen: v5e
topology: v5e:2x2
jax: 0.10.0
libtpu: 0.0.40
codegen_flags: <defaults>
</compile_context>

<pallas_src>
import numpy as np
import jax
import jax.numpy as jnp
from jax.experimental import pallas as pl
from jax.experimental.pallas import tpu as pltpu

_LANE = 128


# ---------------------------------------------------------------------------
# Kernel
# ---------------------------------------------------------------------------
def esn_kernel(x_in_ref, w_ref, h_ref, out_ref, acc_ref):
    # x_in_ref: (1, tn)  precomputed f32 bias row (column tile j)
    # w_ref:    (tm, tk) row/K tile of W          (matmul dtype)
    # h_ref:    (tk, tn) K/column tile of prev_hidden (matmul dtype)
    # out_ref:  (tm, tn) f32 output tile
    # acc_ref:  (tm, tn) f32 VMEM accumulator scratch
    k = pl.program_id(2)

    @pl.when(k == 0)
    def _():
        acc_ref[...] = jnp.zeros_like(acc_ref)

    acc_ref[...] += jnp.dot(w_ref[...], h_ref[...],
                            preferred_element_type=jnp.float32)   # MXU

    @pl.when(k == pl.num_programs(2) - 1)
    def _():
        # Bias row broadcasts over rows (matches torch (r,) + (r,r)).
        out_ref[...] = jnp.tanh(acc_ref[...] + x_in_ref[...])     # VPU + EUP


# ---------------------------------------------------------------------------
# Helpers
# ---------------------------------------------------------------------------
def _round_up(x, m):
    return ((x + m - 1) // m) * m


def _pick_tile(total, pref):
    """Largest multiple of 128 <= pref that divides `total` (total % 128 == 0)."""
    t = max(_LANE, (min(pref, total) // _LANE) * _LANE)
    while total % t:
        t -= _LANE
    return t


def _vmem_capacity_bytes():
    try:
        return int(pltpu.get_tpu_info().vmem_capacity_bytes)
    except Exception:
        return 64 << 20  # conservative (v7x per-TensorCore)


def prepare_esn_weights(w_in, w, matmul_dtype=jnp.bfloat16):
    """Pad the reservoir dim to a multiple of 128 and cast W once (hoisted out
    of the per-timestep path).  Returns (w_in_padded_f32, w_padded, R)."""
    r_size = w.shape[0]
    R = _round_up(r_size, _LANE)
    pad = R - r_size
    w_p = jnp.pad(w.astype(jnp.float32), ((0, pad), (0, pad))).astype(matmul_dtype)
    w_in_p = jnp.pad(w_in.astype(jnp.float32), ((0, pad), (0, 0)))
    return w_in_p, w_p, R


def esn_step(x_in_row, w_padded, h_padded, *, tile_m=256, tile_n=256):
    """One ESN update on padded operands.

    x_in_row:  (1, R) f32 precomputed bias row (W_in @ input, zero-padded)
    w_padded:  (R, R) matmul-dtype padded reservoir matrix
    h_padded:  (R, R) padded previous hidden state (any float dtype)
    Returns a padded (R, R) f32 hidden state that is safe to carry across
    timesteps (padded columns stay zero; padded rows never leak into the
    valid region because the padded columns of W are zero).
    """
    R = w_padded.shape[0]
    assert R % _LANE == 0
    assert w_padded.shape == (R, R)
    assert h_padded.shape == (R, R)
    assert x_in_row.shape == (1, R)

    h_cast = h_padded.astype(w_padded.dtype)
    itemsize = jnp.dtype(w_padded.dtype).itemsize

    cap = _vmem_capacity_bytes()
    tile_budget = cap // 2  # leave the other half for out buffers / headroom

    tm = _pick_tile(R, tile_m)
    tn = _pick_tile(R, tile_n)

    def vmem_need(tm_, tn_, tk_):
        return (2 * (tm_ * tk_ + tk_ * tn_) * itemsize   # double-buffered W, H
                + 2 * tm_ * tn_ * 4                      # double-buffered out
                + tm_ * tn_ * 4                          # f32 accumulator
                + 2 * tn_ * 4)                           # bias row

    # Largest K tile (multiple of 128, dividing R) that keeps the pipelined
    # tiles within the VMEM budget.  For small R this is tk == R (single step).
    tk = R
    while tk > _LANE and (R % tk or vmem_need(tm, tn, tk) > tile_budget):
        tk -= _LANE

    need = vmem_need(tm, tn, tk)
    vmem_limit = int(min(max(need + (16 << 20), 32 << 20), cap - (4 << 20)))

    grid = (R // tm, R // tn, R // tk)

    # Advisory cost for XLA's scheduler (actual DMA traffic, incl. re-fetches).
    cost = pl.CostEstimate(
        flops=2 * R * R * R + R * R,
        transcendentals=R * R,
        bytes_accessed=int(itemsize * R * R * (R // tn)    # W re-read per j
                           + itemsize * R * R * (R // tm)  # H re-read per i
                           + 4 * R * R                     # out
                           + 4 * R * (R // tm)),           # bias row
    )

    return pl.pallas_call(
        esn_kernel,
        out_shape=jax.ShapeDtypeStruct((R, R), jnp.float32),
        grid_spec=pltpu.PrefetchScalarGridSpec(
            num_scalar_prefetch=0,
            grid=grid,
            in_specs=[
                pl.BlockSpec((1, tn), lambda i, j, k: (0, j)),    # bias row
                pl.BlockSpec((tm, tk), lambda i, j, k: (i, k)),   # W tile
                pl.BlockSpec((tk, tn), lambda i, j, k: (k, j)),   # H tile
            ],
            out_specs=pl.BlockSpec((tm, tn), lambda i, j, k: (i, j)),
            scratch_shapes=[pltpu.VMEM((tm, tn), jnp.float32)],
        ),
        compiler_params=pltpu.CompilerParams(
            dimension_semantics=("parallel", "parallel", "arbitrary"),
            vmem_limit_bytes=vmem_limit,
        ),
        cost_estimate=cost,
    )(x_in_row, w_padded, h_cast)


def esn_forward(input_vec, w_in, w, prev_hidden, *, matmul_dtype=jnp.bfloat16,
                tile_m=256, tile_n=256):
    """Single-step convenience wrapper matching ESN.forward exactly.
    input_vec: (input_size,), w_in: (r, input_size), w: (r, r),
    prev_hidden: (r, r) -> (r, r) f32."""
    r_size, input_size = w_in.shape
    assert input_vec.shape == (input_size,)
    assert w.shape == (r_size, r_size)
    assert prev_hidden.shape == (r_size, r_size)

    w_in_p, w_p, R = prepare_esn_weights(w_in, w, matmul_dtype)
    pad = R - r_size

    # Hoisted: x_in computed once in plain XLA (tiny M=1 matvec), f32.
    x_in = (w_in_p @ input_vec.astype(jnp.float32)).reshape(1, R)

    h_p = prev_hidden.astype(jnp.float32)
    if pad:
        h_p = jnp.pad(h_p, ((0, pad), (0, pad)))

    out = esn_step(x_in, w_p, h_p, tile_m=tile_m, tile_n=tile_n)
    if pad:
        out = out[:r_size, :r_size]
    return out


# ---------------------------------------------------------------------------
# Deterministic parameter init (mirrors ESN.__init__, host-side numpy)
# ---------------------------------------------------------------------------
def init_esn_params(input_size, r_size, spectral_radius=0.95, sparsity=0.0,
                    seed=0):
    rs = np.random.RandomState(seed)
    w_in = rs.rand(r_size, input_size) * 2.0 - 1.0
    w_in[rs.rand(*w_in.shape) < sparsity] = 0.0
    reservoir = rs.rand(r_size, r_size) - 0.5
    reservoir[rs.rand(*reservoir.shape) < sparsity] = 0.0
    radius = np.max(np.abs(np.linalg.eigvals(reservoir)))
    w = reservoir * (spectral_radius / radius)
    return (jnp.asarray(w_in, dtype=jnp.float32),
            jnp.asarray(w, dtype=jnp.float32))


if __name__ == "__main__":
    input_size = 32
    r_size = 200  # module default reservoir size (wrapper pads to 256)

    w_in, w = init_esn_params(input_size, r_size, spectral_radius=0.95,
                              sparsity=0.0, seed=0)

    key = jax.random.PRNGKey(0)
    k_x, k_h = jax.random.split(key)
    input_vec = jax.random.normal(k_x, (input_size,), dtype=jnp.float32)
    # Module's init_hidden() returns zeros; use a random hidden state to
    # exercise the W @ H matmul non-trivially.
    prev_hidden = jax.random.normal(k_h, (r_size, r_size), dtype=jnp.float32)

    out = esn_forward(input_vec, w_in, w, prev_hidden)   # bf16 operands by default
    out = jax.block_until_ready(out)

    # Reference in plain f32 JAX (mirrors the PyTorch forward exactly).
    x_in_ref = w_in @ input_vec                       # (r_size,)
    x_w_ref = w @ prev_hidden                         # (r_size, r_size)
    ref = jnp.tanh(x_in_ref + x_w_ref)                # broadcasts over rows

    assert out.shape == (r_size, r_size)
    max_err = float(jnp.max(jnp.abs(out - ref)))
    # bf16 matmul operands (f32 accumulate) -> relaxed tolerance.
    assert jnp.allclose(out, ref, atol=3e-2, rtol=3e-2), f"max err {max_err}"

    print("KERNEL_OK")
</pallas_src>

<mosaic_0001>
module attributes {stable_mosaic.version = 11 : i64} {
  func.func @esn_kernel(%arg0: i32, %arg1: i32, %arg2: i32, %arg3: memref<1x256xf32, #tpu.memory_space<vmem>>, %arg4: memref<256x256xbf16, #tpu.memory_space<vmem>>, %arg5: memref<256x256xbf16, #tpu.memory_space<vmem>>, %arg6: memref<256x256xf32, #tpu.memory_space<vmem>>, %arg7: memref<256x256xf32, #tpu.memory_space<vmem>>) attributes {dimension_semantics = [#tpu.dimension_semantics<parallel>, #tpu.dimension_semantics<parallel>, #tpu.dimension_semantics<arbitrary>], iteration_bounds = array<i64: 1, 1, 1>, scalar_prefetch = 0 : i64, scratch_operands = 1 : i64, tpu.core_type = #tpu.core_type<tc>, window_params = [{transform_indices = @transform_0, window_bounds = array<i64: 1, 256>}, {transform_indices = @transform_1, window_bounds = array<i64: 256, 256>}, {transform_indices = @transform_2, window_bounds = array<i64: 256, 256>}, {transform_indices = @transform_3, window_bounds = array<i64: 256, 256>}]} {
    %c0_i32 = arith.constant 0 : i32
    %0 = arith.cmpi eq, %arg2, %c0_i32 : i32
    %1 = arith.extui %0 : i1 to i32
    %c0_i32_0 = arith.constant 0 : i32
    %2 = arith.cmpi ne, %1, %c0_i32_0 : i32
    scf.if %2 {
      %cst_10 = arith.constant 0.000000e+00 : f32
      %12 = vector.broadcast %cst_10 : f32 to vector<256x256xf32>
      %c0_11 = arith.constant 0 : index
      %c0_12 = arith.constant 0 : index
      %13 = vector.load %arg7[%c0_11, %c0_12] : memref<256x256xf32, #tpu.memory_space<vmem>>, vector<256x256xf32>
      tpu.vector_store %arg7[%c0_11, %c0_12], %12 {strides = array<i32>} : memref<256x256xf32, #tpu.memory_space<vmem>>, vector<256x256xf32>,
    } else {
    }
    %c0 = arith.constant 0 : index
    %c0_1 = arith.constant 0 : index
    %3 = vector.load %arg7[%c0, %c0_1] : memref<256x256xf32, #tpu.memory_space<vmem>>, vector<256x256xf32>
    %c0_2 = arith.constant 0 : index
    %c0_3 = arith.constant 0 : index
    %4 = vector.load %arg4[%c0_2, %c0_3] : memref<256x256xbf16, #tpu.memory_space<vmem>>, vector<256x256xbf16>
    %c0_4 = arith.constant 0 : index
    %c0_5 = arith.constant 0 : index
    %5 = vector.load %arg5[%c0_4, %c0_5] : memref<256x256xbf16, #tpu.memory_space<vmem>>, vector<256x256xbf16>
    %cst = arith.constant dense<0.000000e+00> : vector<256x256xf32>
    %6 = tpu.matmul %4, %5, %cst {dimension_numbers = #tpu.dot_dimension_numbers<[1], [0], [0], [1], [0, 0, 1, 1], [], []>} : vector<256x256xbf16>, vector<256x256xbf16>, vector<256x256xf32> -> vector<256x256xf32>
    %7 = arith.addf %3, %6 : vector<256x256xf32>
    %c0_6 = arith.constant 0 : index
    %c0_7 = arith.constant 0 : index
    %8 = vector.load %arg7[%c0_6, %c0_7] : memref<256x256xf32, #tpu.memory_space<vmem>>, vector<256x256xf32>
    tpu.vector_store %arg7[%c0_6, %c0_7], %7 {strides = array<i32>} : memref<256x256xf32, #tpu.memory_space<vmem>>, vector<256x256xf32>,
    %c0_i32_8 = arith.constant 0 : i32
    %9 = arith.cmpi eq, %arg2, %c0_i32_8 : i32
    %10 = arith.extui %9 : i1 to i32
    %c0_i32_9 = arith.constant 0 : i32
    %11 = arith.cmpi ne, %10, %c0_i32_9 : i32
    scf.if %11 {
      %c0_10 = arith.constant 0 : index
      %c0_11 = arith.constant 0 : index
      %12 = vector.load %arg7[%c0_10, %c0_11] : memref<256x256xf32, #tpu.memory_space<vmem>>, vector<256x256xf32>
      %c0_12 = arith.constant 0 : index
      %c0_13 = arith.constant 0 : index
      %13 = vector.load %arg3[%c0_12, %c0_13] : memref<1x256xf32, #tpu.memory_space<vmem>>, vector<1x256xf32>
      %14 = vector.broadcast %13 : vector<1x256xf32> to vector<256x256xf32>
      %15 = arith.addf %12, %14 : vector<256x256xf32>
      %16 = math.tanh %15 : vector<256x256xf32>
      %c0_14 = arith.constant 0 : index
      %c0_15 = arith.constant 0 : index
      %17 = vector.load %arg6[%c0_14, %c0_15] : memref<256x256xf32, #tpu.memory_space<vmem>>, vector<256x256xf32>
      tpu.vector_store %arg6[%c0_14, %c0_15], %16 {strides = array<i32>} : memref<256x256xf32, #tpu.memory_space<vmem>>, vector<256x256xf32>,
    } else {
    }
    return
  }
  func.func @transform_0(%arg0: i32, %arg1: i32, %arg2: i32) -> (i32, i32) {
    %c0_i32 = arith.constant 0 : i32
    %c0_i32_0 = arith.constant 0 : i32
    return %c0_i32, %arg1 : i32, i32
  }
  func.func @transform_1(%arg0: i32, %arg1: i32, %arg2: i32) -> (i32, i32) {
    %c0_i32 = arith.constant 0 : i32
    return %arg0, %arg2 : i32, i32
  }
  func.func @transform_2(%arg0: i32, %arg1: i32, %arg2: i32) -> (i32, i32) {
    %c0_i32 = arith.constant 0 : i32
    return %arg2, %arg1 : i32, i32
  }
  func.func @transform_3(%arg0: i32, %arg1: i32, %arg2: i32) -> (i32, i32) {
    %c0_i32 = arith.constant 0 : i32
    return %arg0, %arg1 : i32, i32
  }
}

</mosaic_0001>

<llo_original>
// kernel: tpu_custom_call.1
$region0: #{tpu_custom_call.1}
  #allocation0 [shape = 'u32[]', space=smem, size = 0x4, offset = 0x4, fixed_abs, tag = 'smem constant byte address 0x4 - core index']
  #allocation1 [shape = 'u32[72,128]{1,0:T(1,128)}', space=vmem, size = 0x9000, scoped, tag = 'internal scratch']
  #allocation2 [shape = 'f32[256,256]{1,0:T(8,128)}', space=vmem, size = 0x40000, scoped, tag = 'scratch operand']
  %s0 = inlined_call_operand.hbm [shape: f32[1,256], index: 0, kind: input, shape index: {}]
  %s1 = inlined_call_operand.hbm [shape: bf16[256,256], index: 1, kind: input, shape index: {}]
  %s2 = inlined_call_operand.hbm [shape: bf16[256,256], index: 2, kind: input, shape index: {}]
  %s3 = inlined_call_operand.hbm [shape: f32[256,256], index: 3, kind: output, shape index: {}]
  %s4 = sld [smem:[#allocation0]]
  $region42: #{tpu_custom_call.1} parent=0
    _
  %s6 = ssub.s32 1, %s4
  %s7 = scalar_select 0, %s6, %s4
  $region1: #{tpu_custom_call.1} parent=0
    #allocation3 [shape = 'u8[1024]{0}', space=vmem, size = 0x400, scoped, tag = 'input window, operand 0, single buffered']
    #allocation4 [shape = 's32[1]{0}', space=sflag, size = 0x4, scoped, tag = 'scoped memory for tpu_custom_call.1']
    #allocation5 [shape = 's32[1]{0}', space=sflag, size = 0x4, scoped, tag = 'scoped memory for tpu_custom_call.1']
    #allocation6 [shape = 'u8[131072]{0}', space=vmem, size = 0x20000, scoped, tag = 'input window, operand 1, single buffered']
    #allocation7 [shape = 's32[1]{0}', space=sflag, size = 0x4, scoped, tag = 'scoped memory for tpu_custom_call.1']
    #allocation8 [shape = 'u8[131072]{0}', space=vmem, size = 0x20000, scoped, tag = 'input window, operand 2, single buffered']
    #allocation9 [shape = 'u8[262144]{0}', space=vmem, size = 0x40000, scoped, tag = 'output window, operand 0, single buffered']
    %8 = vsyncpa [#allocation4], 0
    %9 = vsyncpa [#allocation7], 0
    %10 = vsyncpa [#allocation5], 0
    // Predicated region
    $region2: #{tpu_custom_call.1} parent=1 // pred_check
      _
    $region3: #{tpu_custom_call.1} parent=1 // pred_check_branch
      %12 = sbr.rel (0) target = $region5
    $region4: #{tpu_custom_call.1} parent=1 // pred_region
      %14 = vsyncadd [#allocation4], 0
      %s16 = sshll.u32 %s0, 4
      %s17 = int_to_ptr.hbm [resolvable:$true] %s16
      %s18 = sshll.u32 [#allocation3], 4
      %s19 = int_to_ptr.vmem [resolvable:$true] %s18
      %21 = dma.hbm_to_vmem [thread:$0]  %s17, 32, %s19, [#allocation4]
    $region5: #{tpu_custom_call.1} parent=1 // pred_fallthru
      _
    // Predicated region
    $region6: #{tpu_custom_call.1} parent=1 // pred_check
      _
    $region7: #{tpu_custom_call.1} parent=1 // pred_check_branch
      %23 = sbr.rel (0) target = $region9
    $region8: #{tpu_custom_call.1} parent=1 // pred_region
      %25 = vsyncadd [#allocation7], 0
      %s26 = sshll.u32 %s1, 4
      %s27 = int_to_ptr.hbm [resolvable:$true] %s26
      %s28 = sshll.u32 [#allocation6], 4
      %s29 = int_to_ptr.vmem [resolvable:$true] %s28
      %34 = dma.hbm_to_vmem [thread:$0]  %s27, 4096, %s29, [#allocation7], 128, 128, 8
    $region9: #{tpu_custom_call.1} parent=1 // pred_fallthru
      _
    // Predicated region
    $region10: #{tpu_custom_call.1} parent=1 // pred_check
      _
    $region11: #{tpu_custom_call.1} parent=1 // pred_check_branch
      %36 = sbr.rel (0) target = $region13
    $region12: #{tpu_custom_call.1} parent=1 // pred_region
      %38 = vsyncadd [#allocation7], 0
      %s39 = sshll.u32 %s2, 4
      %s40 = int_to_ptr.hbm [resolvable:$true] %s39
      %s41 = sshll.u32 [#allocation8], 4
      %s42 = int_to_ptr.vmem [resolvable:$true] %s41
      %47 = dma.hbm_to_vmem [thread:$0]  %s40, 4096, %s42, [#allocation7], 128, 128, 8
    $region13: #{tpu_custom_call.1} parent=1 // pred_fallthru
      _
    // Predicated region
    $region14: #{tpu_custom_call.1} parent=1 // pred_check
      _
    $region15: #{tpu_custom_call.1} parent=1 // pred_check_branch
      %49 = sbr.rel (0) target = $region17
    $region16: #{tpu_custom_call.1} parent=1 // pred_region
      %51 = dma.done [#allocation4], 32
    $region17: #{tpu_custom_call.1} parent=1 // pred_fallthru
      _
    // Predicated region
    $region18: #{tpu_custom_call.1} parent=1 // pred_check
      _
    $region19: #{tpu_custom_call.1} parent=1 // pred_check_branch
      %53 = sbr.rel (0) target = $region21
    $region20: #{tpu_custom_call.1} parent=1 // pred_region
      %55 = dma.done [#allocation7], 4096
    $region21: #{tpu_custom_call.1} parent=1 // pred_fallthru
      _
    // Predicated region
    $region22: #{tpu_custom_call.1} parent=1 // pred_check
      _
    $region23: #{tpu_custom_call.1} parent=1 // pred_check_branch
      %57 = sbr.rel (0) target = $region25
    $region24: #{tpu_custom_call.1} parent=1 // pred_region
      %59 = dma.done [#allocation7], 4096
    $region25: #{tpu_custom_call.1} parent=1 // pred_fallthru
      _
    %p60 = scmp.eq.s32.totalorder 0, 0
    // Predicated region
    $region26: #{tpu_custom_call.1} parent=1 // pred_check
      %p61 = pneg %p60
    $region27: #{tpu_custom_call.1} parent=1 // pred_check_branch
      %63 = sbr.rel (%p61) target = $region29
    $region28: #{tpu_custom_call.1} parent=1 // pred_region
      %64 = vst [vmem:[#allocation2] sm:$0xff] 0.0
      %65 = vst [vmem:[#allocation2 + $0x8] sm:$0xff] 0.0
      %66 = vst [vmem:[#allocation2 + $0x10] sm:$0xff] 0.0
      %67 = vst [vmem:[#allocation2 + $0x18] sm:$0xff] 0.0
      %68 = vst [vmem:[#allocation2 + $0x20] sm:$0xff] 0.0
      %69 = vst [vmem:[#allocation2 + $0x28] sm:$0xff] 0.0
      %70 = vst [vmem:[#allocation2 + $0x30] sm:$0xff] 0.0
      %71 = vst [vmem:[#allocation2 + $0x38] sm:$0xff] 0.0
      %72 = vst [vmem:[#allocation2 + $0x40] sm:$0xff] 0.0
      %73 = vst [vmem:[#allocation2 + $0x48] sm:$0xff] 0.0
      %74 = vst [vmem:[#allocation2 + $0x50] sm:$0xff] 0.0
      %75 = vst [vmem:[#allocation2 + $0x58] sm:$0xff] 0.0
      %76 = vst [vmem:[#allocation2 + $0x60] sm:$0xff] 0.0
      %77 = vst [vmem:[#allocation2 + $0x68] sm:$0xff] 0.0
      %78 = vst [vmem:[#allocation2 + $0x70] sm:$0xff] 0.0
      %79 = vst [vmem:[#allocation2 + $0x78] sm:$0xff] 0.0
      %80 = vst [vmem:[#allocation2 + $0x80] sm:$0xff] 0.0
      %81 = vst [vmem:[#allocation2 + $0x88] sm:$0xff] 0.0
      %82 = vst [vmem:[#allocation2 + $0x90] sm:$0xff] 0.0
      %83 = vst [vmem:[#allocation2 + $0x98] sm:$0xff] 0.0
      %84 = vst [vmem:[#allocation2 + $0xa0] sm:$0xff] 0.0
      %85 = vst [vmem:[#allocation2 + $0xa8] sm:$0xff] 0.0
      %86 = vst [vmem:[#allocation2 + $0xb0] sm:$0xff] 0.0
      %87 = vst [vmem:[#allocation2 + $0xb8] sm:$0xff] 0.0
      %88 = vst [vmem:[#allocation2 + $0xc0] sm:$0xff] 0.0
      %89 = vst [vmem:[#allocation2 + $0xc8] sm:$0xff] 0.0
      %90 = vst [vmem:[#allocation2 + $0xd0] sm:$0xff] 0.0
      %91 = vst [vmem:[#allocation2 + $0xd8] sm:$0xff] 0.0
      %92 = vst [vmem:[#allocation2 + $0xe0] sm:$0xff] 0.0
      %93 = vst [vmem:[#allocation2 + $0xe8] sm:$0xff] 0.0
      %94 = vst [vmem:[#allocation2 + $0xf0] sm:$0xff] 0.0
      %95 = vst [vmem:[#allocation2 + $0xf8] sm:$0xff] 0.0
      %96 = vst [vmem:[#allocation2 + $0x100] sm:$0xff] 0.0
      %97 = vst [vmem:[#allocation2 + $0x108] sm:$0xff] 0.0
      %98 = vst [vmem:[#allocation2 + $0x110] sm:$0xff] 0.0
      %99 = vst [vmem:[#allocation2 + $0x118] sm:$0xff] 0.0
      %100 = vst [vmem:[#allocation2 + $0x120] sm:$0xff] 0.0
      %101 = vst [vmem:[#allocation2 + $0x128] sm:$0xff] 0.0
      %102 = vst [vmem:[#allocation2 + $0x130] sm:$0xff] 0.0
      %103 = vst [vmem:[#allocation2 + $0x138] sm:$0xff] 0.0
      %104 = vst [vmem:[#allocation2 + $0x140] sm:$0xff] 0.0
      %105 = vst [vmem:[#allocation2 + $0x148] sm:$0xff] 0.0
      %106 = vst [vmem:[#allocation2 + $0x150] sm:$0xff] 0.0
      %107 = vst [vmem:[#allocation2 + $0x158] sm:$0xff] 0.0
      %108 = vst [vmem:[#allocation2 + $0x160] sm:$0xff] 0.0
      %109 = vst [vmem:[#allocation2 + $0x168] sm:$0xff] 0.0
      %110 = vst [vmem:[#allocation2 + $0x170] sm:$0xff] 0.0
      %111 = vst [vmem:[#allocation2 + $0x178] sm:$0xff] 0.0
      %112 = vst [vmem:[#allocation2 + $0x180] sm:$0xff] 0.0
      %113 = vst [vmem:[#allocation2 + $0x188] sm:$0xff] 0.0
      %114 = vst [vmem:[#allocation2 + $0x190] sm:$0xff] 0.0
      %115 = vst [vmem:[#allocation2 + $0x198] sm:$0xff] 0.0
      %116 = vst [vmem:[#allocation2 + $0x1a0] sm:$0xff] 0.0
      %117 = vst [vmem:[#allocation2 + $0x1a8] sm:$0xff] 0.0
      %118 = vst [vmem:[#allocation2 + $0x1b0] sm:$0xff] 0.0
      %119 = vst [vmem:[#allocation2 + $0x1b8] sm:$0xff] 0.0
      %120 = vst [vmem:[#allocation2 + $0x1c0] sm:$0xff] 0.0
      %121 = vst [vmem:[#allocation2 + $0x1c8] sm:$0xff] 0.0
      %122 = vst [vmem:[#allocation2 + $0x1d0] sm:$0xff] 0.0
      %123 = vst [vmem:[#allocation2 + $0x1d8] sm:$0xff] 0.0
      %124 = vst [vmem:[#allocation2 + $0x1e0] sm:$0xff] 0.0
      %125 = vst [vmem:[#allocation2 + $0x1e8] sm:$0xff] 0.0
      %126 = vst [vmem:[#allocation2 + $0x1f0] sm:$0xff] 0.0
      %127 = vst [vmem:[#allocation2 + $0x1f8] sm:$0xff] 0.0
    $region29: #{tpu_custom_call.1} parent=1 // pred_fallthru
      _
    %v128 = vld [vmem:[#allocation2] sm:$0xff]
    %v129 = vld [vmem:[#allocation2 + $0x8] sm:$0xff]
    %v130 = vld [vmem:[#allocation2 + $0x10] sm:$0xff]
    %v131 = vld [vmem:[#allocation2 + $0x18] sm:$0xff]
    %v132 = vld [vmem:[#allocation2 + $0x20] sm:$0xff]
    %v133 = vld [vmem:[#allocation2 + $0x28] sm:$0xff]
    %v134 = vld [vmem:[#allocation2 + $0x30] sm:$0xff]
    %v135 = vld [vmem:[#allocation2 + $0x38] sm:$0xff]
    %v136 = vld [vmem:[#allocation2 + $0x40] sm:$0xff]
    %v137 = vld [vmem:[#allocation2 + $0x48] sm:$0xff]
    %v138 = vld [vmem:[#allocation2 + $0x50] sm:$0xff]
    %v139 = vld [vmem:[#allocation2 + $0x58] sm:$0xff]
    %v140 = vld [vmem:[#allocation2 + $0x60] sm:$0xff]
    %v141 = vld [vmem:[#allocation2 + $0x68] sm:$0xff]
    %v142 = vld [vmem:[#allocation2 + $0x70] sm:$0xff]
    %v143 = vld [vmem:[#allocation2 + $0x78] sm:$0xff]
    %v144 = vld [vmem:[#allocation2 + $0x80] sm:$0xff]
    %v145 = vld [vmem:[#allocation2 + $0x88] sm:$0xff]
    %v146 = vld [vmem:[#allocation2 + $0x90] sm:$0xff]
    %v147 = vld [vmem:[#allocation2 + $0x98] sm:$0xff]
    %v148 = vld [vmem:[#allocation2 + $0xa0] sm:$0xff]
    %v149 = vld [vmem:[#allocation2 + $0xa8] sm:$0xff]
    %v150 = vld [vmem:[#allocation2 + $0xb0] sm:$0xff]
    %v151 = vld [vmem:[#allocation2 + $0xb8] sm:$0xff]
    %v152 = vld [vmem:[#allocation2 + $0xc0] sm:$0xff]
    %v153 = vld [vmem:[#allocation2 + $0xc8] sm:$0xff]
    %v154 = vld [vmem:[#allocation2 + $0xd0] sm:$0xff]
    %v155 = vld [vmem:[#allocation2 + $0xd8] sm:$0xff]
    %v156 = vld [vmem:[#allocation2 + $0xe0] sm:$0xff]
    %v157 = vld [vmem:[#allocation2 + $0xe8] sm:$0xff]
    %v158 = vld [vmem:[#allocation2 + $0xf0] sm:$0xff]
    %v159 = vld [vmem:[#allocation2 + $0xf8] sm:$0xff]
    %v160 = vld [vmem:[#allocation2 + $0x100] sm:$0xff]
    %v161 = vld [vmem:[#allocation2 + $0x108] sm:$0xff]
    %v162 = vld [vmem:[#allocation2 + $0x110] sm:$0xff]
    %v163 = vld [vmem:[#allocation2 + $0x118] sm:$0xff]
    %v164 = vld [vmem:[#allocation2 + $0x120] sm:$0xff]
    %v165 = vld [vmem:[#allocation2 + $0x128] sm:$0xff]
    %v166 = vld [vmem:[#allocation2 + $0x130] sm:$0xff]
    %v167 = vld [vmem:[#allocation2 + $0x138] sm:$0xff]
    %v168 = vld [vmem:[#allocation2 + $0x140] sm:$0xff]
    %v169 = vld [vmem:[#allocation2 + $0x148] sm:$0xff]
    %v170 = vld [vmem:[#allocation2 + $0x150] sm:$0xff]
    %v171 = vld [vmem:[#allocation2 + $0x158] sm:$0xff]
    %v172 = vld [vmem:[#allocation2 + $0x160] sm:$0xff]
    %v173 = vld [vmem:[#allocation2 + $0x168] sm:$0xff]
    %v174 = vld [vmem:[#allocation2 + $0x170] sm:$0xff]
    %v175 = vld [vmem:[#allocation2 + $0x178] sm:$0xff]
    %v176 = vld [vmem:[#allocation2 + $0x180] sm:$0xff]
    %v177 = vld [vmem:[#allocation2 + $0x188] sm:$0xff]
    %v178 = vld [vmem:[#allocation2 + $0x190] sm:$0xff]
    %v179 = vld [vmem:[#allocation2 + $0x198] sm:$0xff]
    %v180 = vld [vmem:[#allocation2 + $0x1a0] sm:$0xff]
    %v181 = vld [vmem:[#allocation2 + $0x1a8] sm:$0xff]
    %v182 = vld [vmem:[#allocation2 + $0x1b0] sm:$0xff]
    %v183 = vld [vmem:[#allocation2 + $0x1b8] sm:$0xff]
    %v184 = vld [vmem:[#allocation2 + $0x1c0] sm:$0xff]
    %v185 = vld [vmem:[#allocation2 + $0x1c8] sm:$0xff]
    %v186 = vld [vmem:[#allocation2 + $0x1d0] sm:$0xff]
    %v187 = vld [vmem:[#allocation2 + $0x1d8] sm:$0xff]
    %v188 = vld [vmem:[#allocation2 + $0x1e0] sm:$0xff]
    %v189 = vld [vmem:[#allocation2 + $0x1e8] sm:$0xff]
    %v190 = vld [vmem:[#allocation2 + $0x1f0] sm:$0xff]
    %v191 = vld [vmem:[#allocation2 + $0x1f8] sm:$0xff]
    %v192 = vld [vmem:[#allocation6] sm:$0xff]
    %v193 = vld [vmem:[#allocation6 + $0x8] sm:$0xff]
    %v194 = vld [vmem:[#allocation6 + $0x10] sm:$0xff]
    %v195 = vld [vmem:[#allocation6 + $0x18] sm:$0xff]
    %v196 = vld [vmem:[#allocation6 + $0x20] sm:$0xff]
    %v197 = vld [vmem:[#allocation6 + $0x28] sm:$0xff]
    %v198 = vld [vmem:[#allocation6 + $0x30] sm:$0xff]
    %v199 = vld [vmem:[#allocation6 + $0x38] sm:$0xff]
    %v200 = vld [vmem:[#allocation6 + $0x40] sm:$0xff]
    %v201 = vld [vmem:[#allocation6 + $0x48] sm:$0xff]
    %v202 = vld [vmem:[#allocation6 + $0x50] sm:$0xff]
    %v203 = vld [vmem:[#allocation6 + $0x58] sm:$0xff]
    %v204 = vld [vmem:[#allocation6 + $0x60] sm:$0xff]
    %v205 = vld [vmem:[#allocation6 + $0x68] sm:$0xff]
    %v206 = vld [vmem:[#allocation6 + $0x70] sm:$0xff]
    %v207 = vld [vmem:[#allocation6 + $0x78] sm:$0xff]
    %v208 = vld [vmem:[#allocation6 + $0x80] sm:$0xff]
    %v209 = vld [vmem:[#allocation6 + $0x88] sm:$0xff]
    %v210 = vld [vmem:[#allocation6 + $0x90] sm:$0xff]
    %v211 = vld [vmem:[#allocation6 + $0x98] sm:$0xff]
    %v212 = vld [vmem:[#allocation6 + $0xa0] sm:$0xff]
    %v213 = vld [vmem:[#allocation6 + $0xa8] sm:$0xff]
    %v214 = vld [vmem:[#allocation6 + $0xb0] sm:$0xff]
    %v215 = vld [vmem:[#allocation6 + $0xb8] sm:$0xff]
    %v216 = vld [vmem:[#allocation6 + $0xc0] sm:$0xff]
    %v217 = vld [vmem:[#allocation6 + $0xc8] sm:$0xff]
    %v218 = vld [vmem:[#allocation6 + $0xd0] sm:$0xff]
    %v219 = vld [vmem:[#allocation6 + $0xd8] sm:$0xff]
    %v220 = vld [vmem:[#allocation6 + $0xe0] sm:$0xff]
    %v221 = vld [vmem:[#allocation6 + $0xe8] sm:$0xff]
    %v222 = vld [vmem:[#allocation6 + $0xf0] sm:$0xff]
    %v223 = vld [vmem:[#allocation6 + $0xf8] sm:$0xff]
    %v224 = vld [vmem:[#allocation8] sm:$0xff]
    %v225 = vld [vmem:[#allocation8 + $0x8] sm:$0xff]
    %v226 = vld [vmem:[#allocation8 + $0x10] sm:$0xff]
    %v227 = vld [vmem:[#allocation8 + $0x18] sm:$0xff]
    %v228 = vld [vmem:[#allocation8 + $0x20] sm:$0xff]
    %v229 = vld [vmem:[#allocation8 + $0x28] sm:$0xff]
    %v230 = vld [vmem:[#allocation8 + $0x30] sm:$0xff]
    %v231 = vld [vmem:[#allocation8 + $0x38] sm:$0xff]
    %v232 = vld [vmem:[#allocation8 + $0x40] sm:$0xff]
    %v233 = vld [vmem:[#allocation8 + $0x48] sm:$0xff]
    %v234 = vld [vmem:[#allocation8 + $0x50] sm:$0xff]
    %v235 = vld [vmem:[#allocation8 + $0x58] sm:$0xff]
    %v236 = vld [vmem:[#allocation8 + $0x60] sm:$0xff]
    %v237 = vld [vmem:[#allocation8 + $0x68] sm:$0xff]
    %v238 = vld [vmem:[#allocation8 + $0x70] sm:$0xff]
    %v239 = vld [vmem:[#allocation8 + $0x78] sm:$0xff]
    %v240 = vld [vmem:[#allocation8 + $0x80] sm:$0xff]
    %v241 = vld [vmem:[#allocation8 + $0x88] sm:$0xff]
    %v242 = vld [vmem:[#allocation8 + $0x90] sm:$0xff]
    %v243 = vld [vmem:[#allocation8 + $0x98] sm:$0xff]
    %v244 = vld [vmem:[#allocation8 + $0xa0] sm:$0xff]
    %v245 = vld [vmem:[#allocation8 + $0xa8] sm:$0xff]
    %v246 = vld [vmem:[#allocation8 + $0xb0] sm:$0xff]
    %v247 = vld [vmem:[#allocation8 + $0xb8] sm:$0xff]
    %v248 = vld [vmem:[#allocation8 + $0xc0] sm:$0xff]
    %v249 = vld [vmem:[#allocation8 + $0xc8] sm:$0xff]
    %v250 = vld [vmem:[#allocation8 + $0xd0] sm:$0xff]
    %v251 = vld [vmem:[#allocation8 + $0xd8] sm:$0xff]
    %v252 = vld [vmem:[#allocation8 + $0xe0] sm:$0xff]
    %v253 = vld [vmem:[#allocation8 + $0xe8] sm:$0xff]
    %v254 = vld [vmem:[#allocation8 + $0xf0] sm:$0xff]
    %v255 = vld [vmem:[#allocation8 + $0xf8] sm:$0xff]
    %v288 = vunpack.c.l.b16 %v192
    %v289 = vunpack.c.h.b16 %v192
    %v290 = vunpack.c.l.b16 %v193
    %v291 = vunpack.c.h.b16 %v193
    %v292 = vunpack.c.l.b16 %v194
    %v293 = vunpack.c.h.b16 %v194
    %v294 = vunpack.c.l.b16 %v195
    %v295 = vunpack.c.h.b16 %v195
    %v296 = vunpack.c.l.b16 %v196
    %v297 = vunpack.c.h.b16 %v196
    %v298 = vunpack.c.l.b16 %v197
    %v299 = vunpack.c.h.b16 %v197
    %v300 = vunpack.c.l.b16 %v198
    %v301 = vunpack.c.h.b16 %v198
    %v302 = vunpack.c.l.b16 %v199
    %v303 = vunpack.c.h.b16 %v199
    %v304 = vunpack.c.l.b16 %v200
    %v305 = vunpack.c.h.b16 %v200
    %v306 = vunpack.c.l.b16 %v201
    %v307 = vunpack.c.h.b16 %v201
    %v308 = vunpack.c.l.b16 %v202
    %v309 = vunpack.c.h.b16 %v202
    %v310 = vunpack.c.l.b16 %v203
    %v311 = vunpack.c.h.b16 %v203
    %v312 = vunpack.c.l.b16 %v204
    %v313 = vunpack.c.h.b16 %v204
    %v314 = vunpack.c.l.b16 %v205
    %v315 = vunpack.c.h.b16 %v205
    %v316 = vunpack.c.l.b16 %v206
    %v317 = vunpack.c.h.b16 %v206
    %v318 = vunpack.c.l.b16 %v207
    %v319 = vunpack.c.h.b16 %v207
    %v320 = vunpack.c.l.b16 %v208
    %v321 = vunpack.c.h.b16 %v208
    %v322 = vunpack.c.l.b16 %v209
    %v323 = vunpack.c.h.b16 %v209
    %v324 = vunpack.c.l.b16 %v210
    %v325 = vunpack.c.h.b16 %v210
    %v326 = vunpack.c.l.b16 %v211
    %v327 = vunpack.c.h.b16 %v211
    %v328 = vunpack.c.l.b16 %v212
    %v329 = vunpack.c.h.b16 %v212
    %v330 = vunpack.c.l.b16 %v213
    %v331 = vunpack.c.h.b16 %v213
    %v332 = vunpack.c.l.b16 %v214
    %v333 = vunpack.c.h.b16 %v214
    %v334 = vunpack.c.l.b16 %v215
    %v335 = vunpack.c.h.b16 %v215
    %v336 = vunpack.c.l.b16 %v216
    %v337 = vunpack.c.h.b16 %v216
    %v338 = vunpack.c.l.b16 %v217
    %v339 = vunpack.c.h.b16 %v217
    %v340 = vunpack.c.l.b16 %v218
    %v341 = vunpack.c.h.b16 %v218
    %v342 = vunpack.c.l.b16 %v219
    %v343 = vunpack.c.h.b16 %v219
    %v344 = vunpack.c.l.b16 %v220
    %v345 = vunpack.c.h.b16 %v220
    %v346 = vunpack.c.l.b16 %v221
    %v347 = vunpack.c.h.b16 %v221
    %v348 = vunpack.c.l.b16 %v222
    %v349 = vunpack.c.h.b16 %v222
    %v350 = vunpack.c.l.b16 %v223
    %v351 = vunpack.c.h.b16 %v223
    %v352 = vpack.c.b16 %v290, %v288
    %v353 = vpack.c.b16 %v291, %v289
    %v354 = vpack.c.b16 %v294, %v292
    %v355 = vpack.c.b16 %v295, %v293
    %v356 = vpack.c.b16 %v298, %v296
    %v357 = vpack.c.b16 %v299, %v297
    %v358 = vpack.c.b16 %v302, %v300
    %v359 = vpack.c.b16 %v303, %v301
    %v360 = vpack.c.b16 %v306, %v304
    %v361 = vpack.c.b16 %v307, %v305
    %v362 = vpack.c.b16 %v310, %v308
    %v363 = vpack.c.b16 %v311, %v309
    %v364 = vpack.c.b16 %v314, %v312
    %v365 = vpack.c.b16 %v315, %v313
    %v366 = vpack.c.b16 %v318, %v316
    %v367 = vpack.c.b16 %v319, %v317
    %v368 = vpack.c.b16 %v322, %v320
    %v369 = vpack.c.b16 %v323, %v321
    %v370 = vpack.c.b16 %v326, %v324
    %v371 = vpack.c.b16 %v327, %v325
    %v372 = vpack.c.b16 %v330, %v328
    %v373 = vpack.c.b16 %v331, %v329
    %v374 = vpack.c.b16 %v334, %v332
    %v375 = vpack.c.b16 %v335, %v333
    %v376 = vpack.c.b16 %v338, %v336
    %v377 = vpack.c.b16 %v339, %v337
    %v378 = vpack.c.b16 %v342, %v340
    %v379 = vpack.c.b16 %v343, %v341
    %v380 = vpack.c.b16 %v346, %v344
    %v381 = vpack.c.b16 %v347, %v345
    %v382 = vpack.c.b16 %v350, %v348
    %v383 = vpack.c.b16 %v351, %v349
    %v448 = vunpack.c.l.b16 %v224
    %v449 = vunpack.c.h.b16 %v224
    %v450 = vunpack.c.l.b16 %v225
    %v451 = vunpack.c.h.b16 %v225
    %v452 = vunpack.c.l.b16 %v226
    %v453 = vunpack.c.h.b16 %v226
    %v454 = vunpack.c.l.b16 %v227
    %v455 = vunpack.c.h.b16 %v227
    %v456 = vunpack.c.l.b16 %v228
    %v457 = vunpack.c.h.b16 %v228
    %v458 = vunpack.c.l.b16 %v229
    %v459 = vunpack.c.h.b16 %v229
    %v460 = vunpack.c.l.b16 %v230
    %v461 = vunpack.c.h.b16 %v230
    %v462 = vunpack.c.l.b16 %v231
    %v463 = vunpack.c.h.b16 %v231
    %v464 = vunpack.c.l.b16 %v232
    %v465 = vunpack.c.h.b16 %v232
    %v466 = vunpack.c.l.b16 %v233
    %v467 = vunpack.c.h.b16 %v233
    %v468 = vunpack.c.l.b16 %v234
    %v469 = vunpack.c.h.b16 %v234
    %v470 = vunpack.c.l.b16 %v235
    %v471 = vunpack.c.h.b16 %v235
    %v472 = vunpack.c.l.b16 %v236
    %v473 = vunpack.c.h.b16 %v236
    %v474 = vunpack.c.l.b16 %v237
    %v475 = vunpack.c.h.b16 %v237
    %v476 = vunpack.c.l.b16 %v238
    %v477 = vunpack.c.h.b16 %v238
    %v478 = vunpack.c.l.b16 %v239
    %v479 = vunpack.c.h.b16 %v239
    %v480 = vunpack.c.l.b16 %v240
    %v481 = vunpack.c.h.b16 %v240
    %v482 = vunpack.c.l.b16 %v241
    %v483 = vunpack.c.h.b16 %v241
    %v484 = vunpack.c.l.b16 %v242
    %v485 = vunpack.c.h.b16 %v242
    %v486 = vunpack.c.l.b16 %v243
    %v487 = vunpack.c.h.b16 %v243
    %v488 = vunpack.c.l.b16 %v244
    %v489 = vunpack.c.h.b16 %v244
    %v490 = vunpack.c.l.b16 %v245
    %v491 = vunpack.c.h.b16 %v245
    %v492 = vunpack.c.l.b16 %v246
    %v493 = vunpack.c.h.b16 %v246
    %v494 = vunpack.c.l.b16 %v247
    %v495 = vunpack.c.h.b16 %v247
    %v496 = vunpack.c.l.b16 %v248
    %v497 = vunpack.c.h.b16 %v248
    %v498 = vunpack.c.l.b16 %v249
    %v499 = vunpack.c.h.b16 %v249
    %v500 = vunpack.c.l.b16 %v250
    %v501 = vunpack.c.h.b16 %v250
    %v502 = vunpack.c.l.b16 %v251
    %v503 = vunpack.c.h.b16 %v251
    %v504 = vunpack.c.l.b16 %v252
    %v505 = vunpack.c.h.b16 %v252
    %v506 = vunpack.c.l.b16 %v253
    %v507 = vunpack.c.h.b16 %v253
    %v508 = vunpack.c.l.b16 %v254
    %v509 = vunpack.c.h.b16 %v254
    %v510 = vunpack.c.l.b16 %v255
    %v511 = vunpack.c.h.b16 %v255
    %v512 = vpack.c.b16 %v450, %v448
    %v513 = vpack.c.b16 %v451, %v449
    %v514 = vpack.c.b16 %v454, %v452
    %v515 = vpack.c.b16 %v455, %v453
    %v516 = vpack.c.b16 %v458, %v456
    %v517 = vpack.c.b16 %v459, %v457
    %v518 = vpack.c.b16 %v462, %v460
    %v519 = vpack.c.b16 %v463, %v461
    %v520 = vpack.c.b16 %v466, %v464
    %v521 = vpack.c.b16 %v467, %v465
    %v522 = vpack.c.b16 %v470, %v468
    %v523 = vpack.c.b16 %v471, %v469
    %v524 = vpack.c.b16 %v474, %v472
    %v525 = vpack.c.b16 %v475, %v473
    %v526 = vpack.c.b16 %v478, %v476
    %v527 = vpack.c.b16 %v479, %v477
    %v528 = vpack.c.b16 %v482, %v480
    %v529 = vpack.c.b16 %v483, %v481
    %v530 = vpack.c.b16 %v486, %v484
    %v531 = vpack.c.b16 %v487, %v485
    %v532 = vpack.c.b16 %v490, %v488
    %v533 = vpack.c.b16 %v491, %v489
    %v534 = vpack.c.b16 %v494, %v492
    %v535 = vpack.c.b16 %v495, %v493
    %v536 = vpack.c.b16 %v498, %v496
    %v537 = vpack.c.b16 %v499, %v497
    %v538 = vpack.c.b16 %v502, %v500
    %v539 = vpack.c.b16 %v503, %v501
    %v540 = vpack.c.b16 %v506, %v504
    %v541 = vpack.c.b16 %v507, %v505
    %v542 = vpack.c.b16 %v510, %v508
    %v543 = vpack.c.b16 %v511, %v509
    %576 = vmatpush.bf16.msra.mxu0 %v526
    %577 = vmatpush.bf16.msra.mxu0 %v524
    %578 = vmatpush.bf16.msra.mxu0 %v522
    %579 = vmatpush.bf16.msra.mxu0 %v520
    %580 = vmatpush.bf16.msra.mxu0 %v518
    %581 = vmatpush.bf16.msra.mxu0 %v516
    %582 = vmatpush.bf16.msra.mxu0 %v514
    %583 = vmatpush.bf16.msra.mxu0 %v512
    %584 = vmatmul.bf16.gmra.mxu0 %v352
    %v585 = vpop.f32.mrf.mxu0
    %v586 = vadd.f32 0.0, %v585
    %v587 = vpop.f32.mrf.mxu0
    %v588 = vadd.f32 0.0, %v587
    %589 = vmatmul.bf16.gmra.mxu0 %v354
    %v590 = vpop.f32.mrf.mxu0
    %v591 = vadd.f32 0.0, %v590
    %v592 = vpop.f32.mrf.mxu0
    %v593 = vadd.f32 0.0, %v592
    %594 = vmatmul.bf16.gmra.mxu0 %v356
    %v595 = vpop.f32.mrf.mxu0
    %v596 = vadd.f32 0.0, %v595
    %v597 = vpop.f32.mrf.mxu0
    %v598 = vadd.f32 0.0, %v597
    %599 = vmatmul.bf16.gmra.mxu0 %v358
    %v600 = vpop.f32.mrf.mxu0
    %v601 = vadd.f32 0.0, %v600
    %v602 = vpop.f32.mrf.mxu0
    %v603 = vadd.f32 0.0, %v602
    %604 = vmatmul.bf16.gmra.mxu0 %v360
    %v605 = vpop.f32.mrf.mxu0
    %v606 = vadd.f32 0.0, %v605
    %v607 = vpop.f32.mrf.mxu0
    %v608 = vadd.f32 0.0, %v607
    %609 = vmatmul.bf16.gmra.mxu0 %v362
    %v610 = vpop.f32.mrf.mxu0
    %v611 = vadd.f32 0.0, %v610
    %v612 = vpop.f32.mrf.mxu0
    %v613 = vadd.f32 0.0, %v612
    %614 = vmatmul.bf16.gmra.mxu0 %v364
    %v615 = vpop.f32.mrf.mxu0
    %v616 = vadd.f32 0.0, %v615
    %v617 = vpop.f32.mrf.mxu0
    %v618 = vadd.f32 0.0, %v617
    %619 = vmatmul.bf16.gmra.mxu0 %v366
    %v620 = vpop.f32.mrf.mxu0
    %v621 = vadd.f32 0.0, %v620
    %v622 = vpop.f32.mrf.mxu0
    %v623 = vadd.f32 0.0, %v622
    %624 = vmatmul.bf16.gmra.mxu0 %v368
    %v625 = vpop.f32.mrf.mxu0
    %v626 = vadd.f32 0.0, %v625
    %v627 = vpop.f32.mrf.mxu0
    %v628 = vadd.f32 0.0, %v627
    %629 = vmatmul.bf16.gmra.mxu0 %v370
    %v630 = vpop.f32.mrf.mxu0
    %v631 = vadd.f32 0.0, %v630
    %v632 = vpop.f32.mrf.mxu0
    %v633 = vadd.f32 0.0, %v632
    %634 = vmatmul.bf16.gmra.mxu0 %v372
    %v635 = vpop.f32.mrf.mxu0
    %v636 = vadd.f32 0.0, %v635
    %v637 = vpop.f32.mrf.mxu0
    %v638 = vadd.f32 0.0, %v637
    %639 = vmatmul.bf16.gmra.mxu0 %v374
    %v640 = vpop.f32.mrf.mxu0
    %v641 = vadd.f32 0.0, %v640
    %v642 = vpop.f32.mrf.mxu0
    %v643 = vadd.f32 0.0, %v642
    %644 = vmatmul.bf16.gmra.mxu0 %v376
    %v645 = vpop.f32.mrf.mxu0
    %v646 = vadd.f32 0.0, %v645
    %v647 = vpop.f32.mrf.mxu0
    %v648 = vadd.f32 0.0, %v647
    %649 = vmatmul.bf16.gmra.mxu0 %v378
    %v650 = vpop.f32.mrf.mxu0
    %v651 = vadd.f32 0.0, %v650
    %v652 = vpop.f32.mrf.mxu0
    %v653 = vadd.f32 0.0, %v652
    %654 = vmatmul.bf16.gmra.mxu0 %v380
    %v655 = vpop.f32.mrf.mxu0
    %v656 = vadd.f32 0.0, %v655
    %v657 = vpop.f32.mrf.mxu0
    %v658 = vadd.f32 0.0, %v657
    %659 = vmatmul.bf16.gmra.mxu0 %v382
    %v660 = vpop.f32.mrf.mxu0
    %v661 = vadd.f32 0.0, %v660
    %v662 = vpop.f32.mrf.mxu0
    %v663 = vadd.f32 0.0, %v662
    %664 = vdwg.mxu0
    %665 = vmatpush.bf16.msra.mxu0 %v542
    %666 = vmatpush.bf16.msra.mxu0 %v540
    %667 = vmatpush.bf16.msra.mxu0 %v538
    %668 = vmatpush.bf16.msra.mxu0 %v536
    %669 = vmatpush.bf16.msra.mxu0 %v534
    %670 = vmatpush.bf16.msra.mxu0 %v532
    %671 = vmatpush.bf16.msra.mxu0 %v530
    %672 = vmatpush.bf16.msra.mxu0 %v528
    %673 = vmatmul.bf16.gmra.mxu0 %v353
    %v674 = vpop.f32.mrf.mxu0
    %v675 = vadd.f32 %v586, %v674
    %v676 = vpop.f32.mrf.mxu0
    %v677 = vadd.f32 %v588, %v676
    %678 = vmatmul.bf16.gmra.mxu0 %v355
    %v679 = vpop.f32.mrf.mxu0
    %v680 = vadd.f32 %v591, %v679
    %v681 = vpop.f32.mrf.mxu0
    %v682 = vadd.f32 %v593, %v681
    %683 = vmatmul.bf16.gmra.mxu0 %v357
    %v684 = vpop.f32.mrf.mxu0
    %v685 = vadd.f32 %v596, %v684
    %v686 = vpop.f32.mrf.mxu0
    %v687 = vadd.f32 %v598, %v686
    %688 = vmatmul.bf16.gmra.mxu0 %v359
    %v689 = vpop.f32.mrf.mxu0
    %v690 = vadd.f32 %v601, %v689
    %v691 = vpop.f32.mrf.mxu0
    %v692 = vadd.f32 %v603, %v691
    %693 = vmatmul.bf16.gmra.mxu0 %v361
    %v694 = vpop.f32.mrf.mxu0
    %v695 = vadd.f32 %v606, %v694
    %v696 = vpop.f32.mrf.mxu0
    %v697 = vadd.f32 %v608, %v696
    %698 = vmatmul.bf16.gmra.mxu0 %v363
    %v699 = vpop.f32.mrf.mxu0
    %v700 = vadd.f32 %v611, %v699
    %v701 = vpop.f32.mrf.mxu0
    %v702 = vadd.f32 %v613, %v701
    %703 = vmatmul.bf16.gmra.mxu0 %v365
    %v704 = vpop.f32.mrf.mxu0
    %v705 = vadd.f32 %v616, %v704
    %v706 = vpop.f32.mrf.mxu0
    %v707 = vadd.f32 %v618, %v706
    %708 = vmatmul.bf16.gmra.mxu0 %v367
    %v709 = vpop.f32.mrf.mxu0
    %v710 = vadd.f32 %v621, %v709
    %v711 = vpop.f32.mrf.mxu0
    %v712 = vadd.f32 %v623, %v711
    %713 = vmatmul.bf16.gmra.mxu0 %v369
    %v714 = vpop.f32.mrf.mxu0
    %v715 = vadd.f32 %v626, %v714
    %v716 = vpop.f32.mrf.mxu0
    %v717 = vadd.f32 %v628, %v716
    %718 = vmatmul.bf16.gmra.mxu0 %v371
    %v719 = vpop.f32.mrf.mxu0
    %v720 = vadd.f32 %v631, %v719
    %v721 = vpop.f32.mrf.mxu0
    %v722 = vadd.f32 %v633, %v721
    %723 = vmatmul.bf16.gmra.mxu0 %v373
    %v724 = vpop.f32.mrf.mxu0
    %v725 = vadd.f32 %v636, %v724
    %v726 = vpop.f32.mrf.mxu0
    %v727 = vadd.f32 %v638, %v726
    %728 = vmatmul.bf16.gmra.mxu0 %v375
    %v729 = vpop.f32.mrf.mxu0
    %v730 = vadd.f32 %v641, %v729
    %v731 = vpop.f32.mrf.mxu0
    %v732 = vadd.f32 %v643, %v731
    %733 = vmatmul.bf16.gmra.mxu0 %v377
    %v734 = vpop.f32.mrf.mxu0
    %v735 = vadd.f32 %v646, %v734
    %v736 = vpop.f32.mrf.mxu0
    %v737 = vadd.f32 %v648, %v736
    %738 = vmatmul.bf16.gmra.mxu0 %v379
    %v739 = vpop.f32.mrf.mxu0
    %v740 = vadd.f32 %v651, %v739
    %v741 = vpop.f32.mrf.mxu0
    %v742 = vadd.f32 %v653, %v741
    %743 = vmatmul.bf16.gmra.mxu0 %v381
    %v744 = vpop.f32.mrf.mxu0
    %v745 = vadd.f32 %v656, %v744
    %v746 = vpop.f32.mrf.mxu0
    %v747 = vadd.f32 %v658, %v746
    %748 = vmatmul.bf16.gmra.mxu0 %v383
    %v749 = vpop.f32.mrf.mxu0
    %v750 = vadd.f32 %v661, %v749
    %v751 = vpop.f32.mrf.mxu0
    %v752 = vadd.f32 %v663, %v751
    %753 = vdwg.mxu0
    %754 = vmatpush.bf16.msra.mxu0 %v527
    %755 = vmatpush.bf16.msra.mxu0 %v525
    %756 = vmatpush.bf16.msra.mxu0 %v523
    %757 = vmatpush.bf16.msra.mxu0 %v521
    %758 = vmatpush.bf16.msra.mxu0 %v519
    %759 = vmatpush.bf16.msra.mxu0 %v517
    %760 = vmatpush.bf16.msra.mxu0 %v515
    %761 = vmatpush.bf16.msra.mxu0 %v513
    %762 = vmatmul.bf16.gmra.mxu0 %v352
    %v763 = vpop.f32.mrf.mxu0
    %v764 = vadd.f32 0.0, %v763
    %v765 = vpop.f32.mrf.mxu0
    %v766 = vadd.f32 0.0, %v765
    %767 = vmatmul.bf16.gmra.mxu0 %v354
    %v768 = vpop.f32.mrf.mxu0
    %v769 = vadd.f32 0.0, %v768
    %v770 = vpop.f32.mrf.mxu0
    %v771 = vadd.f32 0.0, %v770
    %772 = vmatmul.bf16.gmra.mxu0 %v356
    %v773 = vpop.f32.mrf.mxu0
    %v774 = vadd.f32 0.0, %v773
    %v775 = vpop.f32.mrf.mxu0
    %v776 = vadd.f32 0.0, %v775
    %777 = vmatmul.bf16.gmra.mxu0 %v358
    %v778 = vpop.f32.mrf.mxu0
    %v779 = vadd.f32 0.0, %v778
    %v780 = vpop.f32.mrf.mxu0
    %v781 = vadd.f32 0.0, %v780
    %782 = vmatmul.bf16.gmra.mxu0 %v360
    %v783 = vpop.f32.mrf.mxu0
    %v784 = vadd.f32 0.0, %v783
    %v785 = vpop.f32.mrf.mxu0
    %v786 = vadd.f32 0.0, %v785
    %787 = vmatmul.bf16.gmra.mxu0 %v362
    %v788 = vpop.f32.mrf.mxu0
    %v789 = vadd.f32 0.0, %v788
    %v790 = vpop.f32.mrf.mxu0
    %v791 = vadd.f32 0.0, %v790
    %792 = vmatmul.bf16.gmra.mxu0 %v364
    %v793 = vpop.f32.mrf.mxu0
    %v794 = vadd.f32 0.0, %v793
    %v795 = vpop.f32.mrf.mxu0
    %v796 = vadd.f32 0.0, %v795
    %797 = vmatmul.bf16.gmra.mxu0 %v366
    %v798 = vpop.f32.mrf.mxu0
    %v799 = vadd.f32 0.0, %v798
    %v800 = vpop.f32.mrf.mxu0
    %v801 = vadd.f32 0.0, %v800
    %802 = vmatmul.bf16.gmra.mxu0 %v368
    %v803 = vpop.f32.mrf.mxu0
    %v804 = vadd.f32 0.0, %v803
    %v805 = vpop.f32.mrf.mxu0
    %v806 = vadd.f32 0.0, %v805
    %807 = vmatmul.bf16.gmra.mxu0 %v370
    %v808 = vpop.f32.mrf.mxu0
    %v809 = vadd.f32 0.0, %v808
    %v810 = vpop.f32.mrf.mxu0
    %v811 = vadd.f32 0.0, %v810
    %812 = vmatmul.bf16.gmra.mxu0 %v372
    %v813 = vpop.f32.mrf.mxu0
    %v814 = vadd.f32 0.0, %v813
    %v815 = vpop.f32.mrf.mxu0
    %v816 = vadd.f32 0.0, %v815
    %817 = vmatmul.bf16.gmra.mxu0 %v374
    %v818 = vpop.f32.mrf.mxu0
    %v819 = vadd.f32 0.0, %v818
    %v820 = vpop.f32.mrf.mxu0
    %v821 = vadd.f32 0.0, %v820
    %822 = vmatmul.bf16.gmra.mxu0 %v376
    %v823 = vpop.f32.mrf.mxu0
    %v824 = vadd.f32 0.0, %v823
    %v825 = vpop.f32.mrf.mxu0
    %v826 = vadd.f32 0.0, %v825
    %827 = vmatmul.bf16.gmra.mxu0 %v378
    %v828 = vpop.f32.mrf.mxu0
    %v829 = vadd.f32 0.0, %v828
    %v830 = vpop.f32.mrf.mxu0
    %v831 = vadd.f32 0.0, %v830
    %832 = vmatmul.bf16.gmra.mxu0 %v380
    %v833 = vpop.f32.mrf.mxu0
    %v834 = vadd.f32 0.0, %v833
    %v835 = vpop.f32.mrf.mxu0
    %v836 = vadd.f32 0.0, %v835
    %837 = vmatmul.bf16.gmra.mxu0 %v382
    %v838 = vpop.f32.mrf.mxu0
    %v839 = vadd.f32 0.0, %v838
    %v840 = vpop.f32.mrf.mxu0
    %v841 = vadd.f32 0.0, %v840
    %842 = vdwg.mxu0
    %843 = vmatpush.bf16.msra.mxu0 %v543
    %844 = vmatpush.bf16.msra.mxu0 %v541
    %845 = vmatpush.bf16.msra.mxu0 %v539
    %846 = vmatpush.bf16.msra.mxu0 %v537
    %847 = vmatpush.bf16.msra.mxu0 %v535
    %848 = vmatpush.bf16.msra.mxu0 %v533
    %849 = vmatpush.bf16.msra.mxu0 %v531
    %850 = vmatpush.bf16.msra.mxu0 %v529
    %851 = vmatmul.bf16.gmra.mxu0 %v353
    %v852 = vpop.f32.mrf.mxu0
    %v853 = vadd.f32 %v764, %v852
    %v854 = vpop.f32.mrf.mxu0
    %v855 = vadd.f32 %v766, %v854
    %856 = vmatmul.bf16.gmra.mxu0 %v355
    %v857 = vpop.f32.mrf.mxu0
    %v858 = vadd.f32 %v769, %v857
    %v859 = vpop.f32.mrf.mxu0
    %v860 = vadd.f32 %v771, %v859
    %861 = vmatmul.bf16.gmra.mxu0 %v357
    %v862 = vpop.f32.mrf.mxu0
    %v863 = vadd.f32 %v774, %v862
    %v864 = vpop.f32.mrf.mxu0
    %v865 = vadd.f32 %v776, %v864
    %866 = vmatmul.bf16.gmra.mxu0 %v359
    %v867 = vpop.f32.mrf.mxu0
    %v868 = vadd.f32 %v779, %v867
    %v869 = vpop.f32.mrf.mxu0
    %v870 = vadd.f32 %v781, %v869
    %871 = vmatmul.bf16.gmra.mxu0 %v361
    %v872 = vpop.f32.mrf.mxu0
    %v873 = vadd.f32 %v784, %v872
    %v874 = vpop.f32.mrf.mxu0
    %v875 = vadd.f32 %v786, %v874
    %876 = vmatmul.bf16.gmra.mxu0 %v363
    %v877 = vpop.f32.mrf.mxu0
    %v878 = vadd.f32 %v789, %v877
    %v879 = vpop.f32.mrf.mxu0
    %v880 = vadd.f32 %v791, %v879
    %881 = vmatmul.bf16.gmra.mxu0 %v365
    %v882 = vpop.f32.mrf.mxu0
    %v883 = vadd.f32 %v794, %v882
    %v884 = vpop.f32.mrf.mxu0
    %v885 = vadd.f32 %v796, %v884
    %886 = vmatmul.bf16.gmra.mxu0 %v367
    %v887 = vpop.f32.mrf.mxu0
    %v888 = vadd.f32 %v799, %v887
    %v889 = vpop.f32.mrf.mxu0
    %v890 = vadd.f32 %v801, %v889
    %891 = vmatmul.bf16.gmra.mxu0 %v369
    %v892 = vpop.f32.mrf.mxu0
    %v893 = vadd.f32 %v804, %v892
    %v894 = vpop.f32.mrf.mxu0
    %v895 = vadd.f32 %v806, %v894
    %896 = vmatmul.bf16.gmra.mxu0 %v371
    %v897 = vpop.f32.mrf.mxu0
    %v898 = vadd.f32 %v809, %v897
    %v899 = vpop.f32.mrf.mxu0
    %v900 = vadd.f32 %v811, %v899
    %901 = vmatmul.bf16.gmra.mxu0 %v373
    %v902 = vpop.f32.mrf.mxu0
    %v903 = vadd.f32 %v814, %v902
    %v904 = vpop.f32.mrf.mxu0
    %v905 = vadd.f32 %v816, %v904
    %906 = vmatmul.bf16.gmra.mxu0 %v375
    %v907 = vpop.f32.mrf.mxu0
    %v908 = vadd.f32 %v819, %v907
    %v909 = vpop.f32.mrf.mxu0
    %v910 = vadd.f32 %v821, %v909
    %911 = vmatmul.bf16.gmra.mxu0 %v377
    %v912 = vpop.f32.mrf.mxu0
    %v913 = vadd.f32 %v824, %v912
    %v914 = vpop.f32.mrf.mxu0
    %v915 = vadd.f32 %v826, %v914
    %916 = vmatmul.bf16.gmra.mxu0 %v379
    %v917 = vpop.f32.mrf.mxu0
    %v918 = vadd.f32 %v829, %v917
    %v919 = vpop.f32.mrf.mxu0
    %v920 = vadd.f32 %v831, %v919
    %921 = vmatmul.bf16.gmra.mxu0 %v381
    %v922 = vpop.f32.mrf.mxu0
    %v923 = vadd.f32 %v834, %v922
    %v924 = vpop.f32.mrf.mxu0
    %v925 = vadd.f32 %v836, %v924
    %926 = vmatmul.bf16.gmra.mxu0 %v383
    %v927 = vpop.f32.mrf.mxu0
    %v928 = vadd.f32 %v839, %v927
    %v929 = vpop.f32.mrf.mxu0
    %v930 = vadd.f32 %v841, %v929
    %931 = vdwg.mxu0
    %v932 = vadd.f32 %v128, %v675
    %v933 = vadd.f32 %v129, %v853
    %v934 = vadd.f32 %v130, %v677
    %v935 = vadd.f32 %v131, %v855
    %v936 = vadd.f32 %v132, %v680
    %v937 = vadd.f32 %v133, %v858
    %v938 = vadd.f32 %v134, %v682
    %v939 = vadd.f32 %v135, %v860
    %v940 = vadd.f32 %v136, %v685
    %v941 = vadd.f32 %v137, %v863
    %v942 = vadd.f32 %v138, %v687
    %v943 = vadd.f32 %v139, %v865
    %v944 = vadd.f32 %v140, %v690
    %v945 = vadd.f32 %v141, %v868
    %v946 = vadd.f32 %v142, %v692
    %v947 = vadd.f32 %v143, %v870
    %v948 = vadd.f32 %v144, %v695
    %v949 = vadd.f32 %v145, %v873
    %v950 = vadd.f32 %v146, %v697
    %v951 = vadd.f32 %v147, %v875
    %v952 = vadd.f32 %v148, %v700
    %v953 = vadd.f32 %v149, %v878
    %v954 = vadd.f32 %v150, %v702
    %v955 = vadd.f32 %v151, %v880
    %v956 = vadd.f32 %v152, %v705
    %v957 = vadd.f32 %v153, %v883
    %v958 = vadd.f32 %v154, %v707
    %v959 = vadd.f32 %v155, %v885
    %v960 = vadd.f32 %v156, %v710
    %v961 = vadd.f32 %v157, %v888
    %v962 = vadd.f32 %v158, %v712
    %v963 = vadd.f32 %v159, %v890
    %v964 = vadd.f32 %v160, %v715
    %v965 = vadd.f32 %v161, %v893
    %v966 = vadd.f32 %v162, %v717
    %v967 = vadd.f32 %v163, %v895
    %v968 = vadd.f32 %v164, %v720
    %v969 = vadd.f32 %v165, %v898
    %v970 = vadd.f32 %v166, %v722
    %v971 = vadd.f32 %v167, %v900
    %v972 = vadd.f32 %v168, %v725
    %v973 = vadd.f32 %v169, %v903
    %v974 = vadd.f32 %v170, %v727
    %v975 = vadd.f32 %v171, %v905
    %v976 = vadd.f32 %v172, %v730
    %v977 = vadd.f32 %v173, %v908
    %v978 = vadd.f32 %v174, %v732
    %v979 = vadd.f32 %v175, %v910
    %v980 = vadd.f32 %v176, %v735
    %v981 = vadd.f32 %v177, %v913
    %v982 = vadd.f32 %v178, %v737
    %v983 = vadd.f32 %v179, %v915
    %v984 = vadd.f32 %v180, %v740
    %v985 = vadd.f32 %v181, %v918
    %v986 = vadd.f32 %v182, %v742
    %v987 = vadd.f32 %v183, %v920
    %v988 = vadd.f32 %v184, %v745
    %v989 = vadd.f32 %v185, %v923
    %v990 = vadd.f32 %v186, %v747
    %v991 = vadd.f32 %v187, %v925
    %v992 = vadd.f32 %v188, %v750
    %v993 = vadd.f32 %v189, %v928
    %v994 = vadd.f32 %v190, %v752
    %v995 = vadd.f32 %v191, %v930
    %996 = vst [vmem:[#allocation2] sm:$0xff] %v932
    %997 = vst [vmem:[#allocation2 + $0x8] sm:$0xff] %v933
    %998 = vst [vmem:[#allocation2 + $0x10] sm:$0xff] %v934
    %999 = vst [vmem:[#allocation2 + $0x18] sm:$0xff] %v935
    %1000 = vst [vmem:[#allocation2 + $0x20] sm:$0xff] %v936
    %1001 = vst [vmem:[#allocation2 + $0x28] sm:$0xff] %v937
    %1002 = vst [vmem:[#allocation2 + $0x30] sm:$0xff] %v938
    %1003 = vst [vmem:[#allocation2 + $0x38] sm:$0xff] %v939
    %1004 = vst [vmem:[#allocation2 + $0x40] sm:$0xff] %v940
    %1005 = vst [vmem:[#allocation2 + $0x48] sm:$0xff] %v941
    %1006 = vst [vmem:[#allocation2 + $0x50] sm:$0xff] %v942
    %1007 = vst [vmem:[#allocation2 + $0x58] sm:$0xff] %v943
    %1008 = vst [vmem:[#allocation2 + $0x60] sm:$0xff] %v944
    %1009 = vst [vmem:[#allocation2 + $0x68] sm:$0xff] %v945
    %1010 = vst [vmem:[#allocation2 + $0x70] sm:$0xff] %v946
    %1011 = vst [vmem:[#allocation2 + $0x78] sm:$0xff] %v947
    %1012 = vst [vmem:[#allocation2 + $0x80] sm:$0xff] %v948
    %1013 = vst [vmem:[#allocation2 + $0x88] sm:$0xff] %v949
    %1014 = vst [vmem:[#allocation2 + $0x90] sm:$0xff] %v950
    %1015 = vst [vmem:[#allocation2 + $0x98] sm:$0xff] %v951
    %1016 = vst [vmem:[#allocation2 + $0xa0] sm:$0xff] %v952
    %1017 = vst [vmem:[#allocation2 + $0xa8] sm:$0xff] %v953
    %1018 = vst [vmem:[#allocation2 + $0xb0] sm:$0xff] %v954
    %1019 = vst [vmem:[#allocation2 + $0xb8] sm:$0xff] %v955
    %1020 = vst [vmem:[#allocation2 + $0xc0] sm:$0xff] %v956
    %1021 = vst [vmem:[#allocation2 + $0xc8] sm:$0xff] %v957
    %1022 = vst [vmem:[#allocation2 + $0xd0] sm:$0xff] %v958
    %1023 = vst [vmem:[#allocation2 + $0xd8] sm:$0xff] %v959
    %1024 = vst [vmem:[#allocation2 + $0xe0] sm:$0xff] %v960
    %1025 = vst [vmem:[#allocation2 + $0xe8] sm:$0xff] %v961
    %1026 = vst [vmem:[#allocation2 + $0xf0] sm:$0xff] %v962
    %1027 = vst [vmem:[#allocation2 + $0xf8] sm:$0xff] %v963
    %1028 = vst [vmem:[#allocation2 + $0x100] sm:$0xff] %v964
    %1029 = vst [vmem:[#allocation2 + $0x108] sm:$0xff] %v965
    %1030 = vst [vmem:[#allocation2 + $0x110] sm:$0xff] %v966
    %1031 = vst [vmem:[#allocation2 + $0x118] sm:$0xff] %v967
    %1032 = vst [vmem:[#allocation2 + $0x120] sm:$0xff] %v968
    %1033 = vst [vmem:[#allocation2 + $0x128] sm:$0xff] %v969
    %1034 = vst [vmem:[#allocation2 + $0x130] sm:$0xff] %v970
    %1035 = vst [vmem:[#allocation2 + $0x138] sm:$0xff] %v971
    %1036 = vst [vmem:[#allocation2 + $0x140] sm:$0xff] %v972
    %1037 = vst [vmem:[#allocation2 + $0x148] sm:$0xff] %v973
    %1038 = vst [vmem:[#allocation2 + $0x150] sm:$0xff] %v974
    %1039 = vst [vmem:[#allocation2 + $0x158] sm:$0xff] %v975
    %1040 = vst [vmem:[#allocation2 + $0x160] sm:$0xff] %v976
    %1041 = vst [vmem:[#allocation2 + $0x168] sm:$0xff] %v977
    %1042 = vst [vmem:[#allocation2 + $0x170] sm:$0xff] %v978
    %1043 = vst [vmem:[#allocation2 + $0x178] sm:$0xff] %v979
    %1044 = vst [vmem:[#allocation2 + $0x180] sm:$0xff] %v980
    %1045 = vst [vmem:[#allocation2 + $0x188] sm:$0xff] %v981
    %1046 = vst [vmem:[#allocation2 + $0x190] sm:$0xff] %v982
    %1047 = vst [vmem:[#allocation2 + $0x198] sm:$0xff] %v983
    %1048 = vst [vmem:[#allocation2 + $0x1a0] sm:$0xff] %v984
    %1049 = vst [vmem:[#allocation2 + $0x1a8] sm:$0xff] %v985
    %1050 = vst [vmem:[#allocation2 + $0x1b0] sm:$0xff] %v986
    %1051 = vst [vmem:[#allocation2 + $0x1b8] sm:$0xff] %v987
    %1052 = vst [vmem:[#allocation2 + $0x1c0] sm:$0xff] %v988
    %1053 = vst [vmem:[#allocation2 + $0x1c8] sm:$0xff] %v989
    %1054 = vst [vmem:[#allocation2 + $0x1d0] sm:$0xff] %v990
    %1055 = vst [vmem:[#allocation2 + $0x1d8] sm:$0xff] %v991
    %1056 = vst [vmem:[#allocation2 + $0x1e0] sm:$0xff] %v992
    %1057 = vst [vmem:[#allocation2 + $0x1e8] sm:$0xff] %v993
    %1058 = vst [vmem:[#allocation2 + $0x1f0] sm:$0xff] %v994
    %1059 = vst [vmem:[#allocation2 + $0x1f8] sm:$0xff] %v995
    // Predicated region
    $region30: #{tpu_custom_call.1} parent=1 // pred_check
      %p1060 = pneg %p60
    $region31: #{tpu_custom_call.1} parent=1 // pred_check_branch
      %1062 = sbr.rel (%p1060) target = $region33
    $region32: #{tpu_custom_call.1} parent=1 // pred_region
      %v1063 = vld [vmem:[#allocation2] sm:$0xff]
      %v1064 = vld [vmem:[#allocation2 + $0x8] sm:$0xff]
      %v1065 = vld [vmem:[#allocation2 + $0x10] sm:$0xff]
      %v1066 = vld [vmem:[#allocation2 + $0x18] sm:$0xff]
      %v1067 = vld [vmem:[#allocation2 + $0x20] sm:$0xff]
      %v1068 = vld [vmem:[#allocation2 + $0x28] sm:$0xff]
      %v1069 = vld [vmem:[#allocation2 + $0x30] sm:$0xff]
      %v1070 = vld [vmem:[#allocation2 + $0x38] sm:$0xff]
      %v1071 = vld [vmem:[#allocation2 + $0x40] sm:$0xff]
      %v1072 = vld [vmem:[#allocation2 + $0x48] sm:$0xff]
      %v1073 = vld [vmem:[#allocation2 + $0x50] sm:$0xff]
      %v1074 = vld [vmem:[#allocation2 + $0x58] sm:$0xff]
      %v1075 = vld [vmem:[#allocation2 + $0x60] sm:$0xff]
      %v1076 = vld [vmem:[#allocation2 + $0x68] sm:$0xff]
      %v1077 = vld [vmem:[#allocation2 + $0x70] sm:$0xff]
      %v1078 = vld [vmem:[#allocation2 + $0x78] sm:$0xff]
      %v1079 = vld [vmem:[#allocation2 + $0x80] sm:$0xff]
      %v1080 = vld [vmem:[#allocation2 + $0x88] sm:$0xff]
      %v1081 = vld [vmem:[#allocation2 + $0x90] sm:$0xff]
      %v1082 = vld [vmem:[#allocation2 + $0x98] sm:$0xff]
      %v1083 = vld [vmem:[#allocation2 + $0xa0] sm:$0xff]
      %v1084 = vld [vmem:[#allocation2 + $0xa8] sm:$0xff]
      %v1085 = vld [vmem:[#allocation2 + $0xb0] sm:$0xff]
      %v1086 = vld [vmem:[#allocation2 + $0xb8] sm:$0xff]
      %v1087 = vld [vmem:[#allocation2 + $0xc0] sm:$0xff]
      %v1088 = vld [vmem:[#allocation2 + $0xc8] sm:$0xff]
      %v1089 = vld [vmem:[#allocation2 + $0xd0] sm:$0xff]
      %v1090 = vld [vmem:[#allocation2 + $0xd8] sm:$0xff]
      %v1091 = vld [vmem:[#allocation2 + $0xe0] sm:$0xff]
      %v1092 = vld [vmem:[#allocation2 + $0xe8] sm:$0xff]
      %v1093 = vld [vmem:[#allocation2 + $0xf0] sm:$0xff]
      %v1094 = vld [vmem:[#allocation2 + $0xf8] sm:$0xff]
      %v1095 = vld [vmem:[#allocation2 + $0x100] sm:$0xff]
      %v1096 = vld [vmem:[#allocation2 + $0x108] sm:$0xff]
      %v1097 = vld [vmem:[#allocation2 + $0x110] sm:$0xff]
      %v1098 = vld [vmem:[#allocation2 + $0x118] sm:$0xff]
      %v1099 = vld [vmem:[#allocation2 + $0x120] sm:$0xff]
      %v1100 = vld [vmem:[#allocation2 + $0x128] sm:$0xff]
      %v1101 = vld [vmem:[#allocation2 + $0x130] sm:$0xff]
      %v1102 = vld [vmem:[#allocation2 + $0x138] sm:$0xff]
      %v1103 = vld [vmem:[#allocation2 + $0x140] sm:$0xff]
      %v1104 = vld [vmem:[#allocation2 + $0x148] sm:$0xff]
      %v1105 = vld [vmem:[#allocation2 + $0x150] sm:$0xff]
      %v1106 = vld [vmem:[#allocation2 + $0x158] sm:$0xff]
      %v1107 = vld [vmem:[#allocation2 + $0x160] sm:$0xff]
      %v1108 = vld [vmem:[#allocation2 + $0x168] sm:$0xff]
      %v1109 = vld [vmem:[#allocation2 + $0x170] sm:$0xff]
      %v1110 = vld [vmem:[#allocation2 + $0x178] sm:$0xff]
      %v1111 = vld [vmem:[#allocation2 + $0x180] sm:$0xff]
      %v1112 = vld [vmem:[#allocation2 + $0x188] sm:$0xff]
      %v1113 = vld [vmem:[#allocation2 + $0x190] sm:$0xff]
      %v1114 = vld [vmem:[#allocation2 + $0x198] sm:$0xff]
      %v1115 = vld [vmem:[#allocation2 + $0x1a0] sm:$0xff]
      %v1116 = vld [vmem:[#allocation2 + $0x1a8] sm:$0xff]
      %v1117 = vld [vmem:[#allocation2 + $0x1b0] sm:$0xff]
      %v1118 = vld [vmem:[#allocation2 + $0x1b8] sm:$0xff]
      %v1119 = vld [vmem:[#allocation2 + $0x1c0] sm:$0xff]
      %v1120 = vld [vmem:[#allocation2 + $0x1c8] sm:$0xff]
      %v1121 = vld [vmem:[#allocation2 + $0x1d0] sm:$0xff]
      %v1122 = vld [vmem:[#allocation2 + $0x1d8] sm:$0xff]
      %v1123 = vld [vmem:[#allocation2 + $0x1e0] sm:$0xff]
      %v1124 = vld [vmem:[#allocation2 + $0x1e8] sm:$0xff]
      %v1125 = vld [vmem:[#allocation2 + $0x1f0] sm:$0xff]
      %v1126 = vld [vmem:[#allocation2 + $0x1f8] sm:$0xff]
      %v1127 = vld [vmem:[#allocation3] sm:$0x3]
      %v1129 = vperm.slane %v1127, 0
      %v1130 = vperm.slane %v1127, 1
      %v1133 = vadd.f32 %v1063, %v1129
      %v1134 = vadd.f32 %v1064, %v1130
      %v1135 = vadd.f32 %v1065, %v1129
      %v1136 = vadd.f32 %v1066, %v1130
      %v1137 = vadd.f32 %v1067, %v1129
      %v1138 = vadd.f32 %v1068, %v1130
      %v1139 = vadd.f32 %v1069, %v1129
      %v1140 = vadd.f32 %v1070, %v1130
      %v1141 = vadd.f32 %v1071, %v1129
      %v1142 = vadd.f32 %v1072, %v1130
      %v1143 = vadd.f32 %v1073, %v1129
      %v1144 = vadd.f32 %v1074, %v1130
      %v1145 = vadd.f32 %v1075, %v1129
      %v1146 = vadd.f32 %v1076, %v1130
      %v1147 = vadd.f32 %v1077, %v1129
      %v1148 = vadd.f32 %v1078, %v1130
      %v1149 = vadd.f32 %v1079, %v1129
      %v1150 = vadd.f32 %v1080, %v1130
      %v1151 = vadd.f32 %v1081, %v1129
      %v1152 = vadd.f32 %v1082, %v1130
      %v1153 = vadd.f32 %v1083, %v1129
      %v1154 = vadd.f32 %v1084, %v1130
      %v1155 = vadd.f32 %v1085, %v1129
      %v1156 = vadd.f32 %v1086, %v1130
      %v1157 = vadd.f32 %v1087, %v1129
      %v1158 = vadd.f32 %v1088, %v1130
      %v1159 = vadd.f32 %v1089, %v1129
      %v1160 = vadd.f32 %v1090, %v1130
      %v1161 = vadd.f32 %v1091, %v1129
      %v1162 = vadd.f32 %v1092, %v1130
      %v1163 = vadd.f32 %v1093, %v1129
      %v1164 = vadd.f32 %v1094, %v1130
      %v1165 = vadd.f32 %v1095, %v1129
      %v1166 = vadd.f32 %v1096, %v1130
      %v1167 = vadd.f32 %v1097, %v1129
      %v1168 = vadd.f32 %v1098, %v1130
      %v1169 = vadd.f32 %v1099, %v1129
      %v1170 = vadd.f32 %v1100, %v1130
      %v1171 = vadd.f32 %v1101, %v1129
      %v1172 = vadd.f32 %v1102, %v1130
      %v1173 = vadd.f32 %v1103, %v1129
      %v1174 = vadd.f32 %v1104, %v1130
      %v1175 = vadd.f32 %v1105, %v1129
      %v1176 = vadd.f32 %v1106, %v1130
      %v1177 = vadd.f32 %v1107, %v1129
      %v1178 = vadd.f32 %v1108, %v1130
      %v1179 = vadd.f32 %v1109, %v1129
      %v1180 = vadd.f32 %v1110, %v1130
      %v1181 = vadd.f32 %v1111, %v1129
      %v1182 = vadd.f32 %v1112, %v1130
      %v1183 = vadd.f32 %v1113, %v1129
      %v1184 = vadd.f32 %v1114, %v1130
      %v1185 = vadd.f32 %v1115, %v1129
      %v1186 = vadd.f32 %v1116, %v1130
      %v1187 = vadd.f32 %v1117, %v1129
      %v1188 = vadd.f32 %v1118, %v1130
      %v1189 = vadd.f32 %v1119, %v1129
      %v1190 = vadd.f32 %v1120, %v1130
      %v1191 = vadd.f32 %v1121, %v1129
      %v1192 = vadd.f32 %v1122, %v1130
      %v1193 = vadd.f32 %v1123, %v1129
      %v1194 = vadd.f32 %v1124, %v1130
      %v1195 = vadd.f32 %v1125, %v1129
      %v1196 = vadd.f32 %v1126, %v1130
      %v1197 = vtanh.pop %v1133
      %v1198 = vtanh.pop %v1134
      %v1199 = vtanh.pop %v1135
      %v1200 = vtanh.pop %v1136
      %v1201 = vtanh.pop %v1137
      %v1202 = vtanh.pop %v1138
      %v1203 = vtanh.pop %v1139
      %v1204 = vtanh.pop %v1140
      %v1205 = vtanh.pop %v1141
      %v1206 = vtanh.pop %v1142
      %v1207 = vtanh.pop %v1143
      %v1208 = vtanh.pop %v1144
      %v1209 = vtanh.pop %v1145
      %v1210 = vtanh.pop %v1146
      %v1211 = vtanh.pop %v1147
      %v1212 = vtanh.pop %v1148
      %v1213 = vtanh.pop %v1149
      %v1214 = vtanh.pop %v1150
      %v1215 = vtanh.pop %v1151
      %v1216 = vtanh.pop %v1152
      %v1217 = vtanh.pop %v1153
      %v1218 = vtanh.pop %v1154
      %v1219 = vtanh.pop %v1155
      %v1220 = vtanh.pop %v1156
      %v1221 = vtanh.pop %v1157
      %v1222 = vtanh.pop %v1158
      %v1223 = vtanh.pop %v1159
      %v1224 = vtanh.pop %v1160
      %v1225 = vtanh.pop %v1161
      %v1226 = vtanh.pop %v1162
      %v1227 = vtanh.pop %v1163
      %v1228 = vtanh.pop %v1164
      %v1229 = vtanh.pop %v1165
      %v1230 = vtanh.pop %v1166
      %v1231 = vtanh.pop %v1167
      %v1232 = vtanh.pop %v1168
      %v1233 = vtanh.pop %v1169
      %v1234 = vtanh.pop %v1170
      %v1235 = vtanh.pop %v1171
      %v1236 = vtanh.pop %v1172
      %v1237 = vtanh.pop %v1173
      %v1238 = vtanh.pop %v1174
      %v1239 = vtanh.pop %v1175
      %v1240 = vtanh.pop %v1176
      %v1241 = vtanh.pop %v1177
      %v1242 = vtanh.pop %v1178
      %v1243 = vtanh.pop %v1179
      %v1244 = vtanh.pop %v1180
      %v1245 = vtanh.pop %v1181
      %v1246 = vtanh.pop %v1182
      %v1247 = vtanh.pop %v1183
      %v1248 = vtanh.pop %v1184
      %v1249 = vtanh.pop %v1185
      %v1250 = vtanh.pop %v1186
      %v1251 = vtanh.pop %v1187
      %v1252 = vtanh.pop %v1188
      %v1253 = vtanh.pop %v1189
      %v1254 = vtanh.pop %v1190
      %v1255 = vtanh.pop %v1191
      %v1256 = vtanh.pop %v1192
      %v1257 = vtanh.pop %v1193
      %v1258 = vtanh.pop %v1194
      %v1259 = vtanh.pop %v1195
      %v1260 = vtanh.pop %v1196
      %1261 = vst [vmem:[#allocation9] sm:$0xff] %v1197
      %1262 = vst [vmem:[#allocation9 + $0x8] sm:$0xff] %v1198
      %1263 = vst [vmem:[#allocation9 + $0x10] sm:$0xff] %v1199
      %1264 = vst [vmem:[#allocation9 + $0x18] sm:$0xff] %v1200
      %1265 = vst [vmem:[#allocation9 + $0x20] sm:$0xff] %v1201
      %1266 = vst [vmem:[#allocation9 + $0x28] sm:$0xff] %v1202
      %1267 = vst [vmem:[#allocation9 + $0x30] sm:$0xff] %v1203
      %1268 = vst [vmem:[#allocation9 + $0x38] sm:$0xff] %v1204
      %1269 = vst [vmem:[#allocation9 + $0x40] sm:$0xff] %v1205
      %1270 = vst [vmem:[#allocation9 + $0x48] sm:$0xff] %v1206
      %1271 = vst [vmem:[#allocation9 + $0x50] sm:$0xff] %v1207
      %1272 = vst [vmem:[#allocation9 + $0x58] sm:$0xff] %v1208
      %1273 = vst [vmem:[#allocation9 + $0x60] sm:$0xff] %v1209
      %1274 = vst [vmem:[#allocation9 + $0x68] sm:$0xff] %v1210
      %1275 = vst [vmem:[#allocation9 + $0x70] sm:$0xff] %v1211
      %1276 = vst [vmem:[#allocation9 + $0x78] sm:$0xff] %v1212
      %1277 = vst [vmem:[#allocation9 + $0x80] sm:$0xff] %v1213
      %1278 = vst [vmem:[#allocation9 + $0x88] sm:$0xff] %v1214
      %1279 = vst [vmem:[#allocation9 + $0x90] sm:$0xff] %v1215
      %1280 = vst [vmem:[#allocation9 + $0x98] sm:$0xff] %v1216
      %1281 = vst [vmem:[#allocation9 + $0xa0] sm:$0xff] %v1217
      %1282 = vst [vmem:[#allocation9 + $0xa8] sm:$0xff] %v1218
      %1283 = vst [vmem:[#allocation9 + $0xb0] sm:$0xff] %v1219
      %1284 = vst [vmem:[#allocation9 + $0xb8] sm:$0xff] %v1220
      %1285 = vst [vmem:[#allocation9 + $0xc0] sm:$0xff] %v1221
      %1286 = vst [vmem:[#allocation9 + $0xc8] sm:$0xff] %v1222
      %1287 = vst [vmem:[#allocation9 + $0xd0] sm:$0xff] %v1223
      %1288 = vst [vmem:[#allocation9 + $0xd8] sm:$0xff] %v1224
      %1289 = vst [vmem:[#allocation9 + $0xe0] sm:$0xff] %v1225
      %1290 = vst [vmem:[#allocation9 + $0xe8] sm:$0xff] %v1226
      %1291 = vst [vmem:[#allocation9 + $0xf0] sm:$0xff] %v1227
      %1292 = vst [vmem:[#allocation9 + $0xf8] sm:$0xff] %v1228
      %1293 = vst [vmem:[#allocation9 + $0x100] sm:$0xff] %v1229
      %1294 = vst [vmem:[#allocation9 + $0x108] sm:$0xff] %v1230
      %1295 = vst [vmem:[#allocation9 + $0x110] sm:$0xff] %v1231
      %1296 = vst [vmem:[#allocation9 + $0x118] sm:$0xff] %v1232
      %1297 = vst [vmem:[#allocation9 + $0x120] sm:$0xff] %v1233
      %1298 = vst [vmem:[#allocation9 + $0x128] sm:$0xff] %v1234
      %1299 = vst [vmem:[#allocation9 + $0x130] sm:$0xff] %v1235
      %1300 = vst [vmem:[#allocation9 + $0x138] sm:$0xff] %v1236
      %1301 = vst [vmem:[#allocation9 + $0x140] sm:$0xff] %v1237
      %1302 = vst [vmem:[#allocation9 + $0x148] sm:$0xff] %v1238
      %1303 = vst [vmem:[#allocation9 + $0x150] sm:$0xff] %v1239
      %1304 = vst [vmem:[#allocation9 + $0x158] sm:$0xff] %v1240
      %1305 = vst [vmem:[#allocation9 + $0x160] sm:$0xff] %v1241
      %1306 = vst [vmem:[#allocation9 + $0x168] sm:$0xff] %v1242
      %1307 = vst [vmem:[#allocation9 + $0x170] sm:$0xff] %v1243
      %1308 = vst [vmem:[#allocation9 + $0x178] sm:$0xff] %v1244
      %1309 = vst [vmem:[#allocation9 + $0x180] sm:$0xff] %v1245
      %1310 = vst [vmem:[#allocation9 + $0x188] sm:$0xff] %v1246
      %1311 = vst [vmem:[#allocation9 + $0x190] sm:$0xff] %v1247
      %1312 = vst [vmem:[#allocation9 + $0x198] sm:$0xff] %v1248
      %1313 = vst [vmem:[#allocation9 + $0x1a0] sm:$0xff] %v1249
      %1314 = vst [vmem:[#allocation9 + $0x1a8] sm:$0xff] %v1250
      %1315 = vst [vmem:[#allocation9 + $0x1b0] sm:$0xff] %v1251
      %1316 = vst [vmem:[#allocation9 + $0x1b8] sm:$0xff] %v1252
      %1317 = vst [vmem:[#allocation9 + $0x1c0] sm:$0xff] %v1253
      %1318 = vst [vmem:[#allocation9 + $0x1c8] sm:$0xff] %v1254
      %1319 = vst [vmem:[#allocation9 + $0x1d0] sm:$0xff] %v1255
      %1320 = vst [vmem:[#allocation9 + $0x1d8] sm:$0xff] %v1256
      %1321 = vst [vmem:[#allocation9 + $0x1e0] sm:$0xff] %v1257
      %1322 = vst [vmem:[#allocation9 + $0x1e8] sm:$0xff] %v1258
      %1323 = vst [vmem:[#allocation9 + $0x1f0] sm:$0xff] %v1259
      %1324 = vst [vmem:[#allocation9 + $0x1f8] sm:$0xff] %v1260
    $region33: #{tpu_custom_call.1} parent=1 // pred_fallthru
      _
    // Predicated region
    $region34: #{tpu_custom_call.1} parent=1 // pred_check
      _
    $region35: #{tpu_custom_call.1} parent=1 // pred_check_branch
      %1326 = sbr.rel (0) target = $region37
    $region36: #{tpu_custom_call.1} parent=1 // pred_region
      %1328 = vsyncadd [#allocation5], 0
      %s1329 = sshll.u32 [#allocation9], 4
      %s1330 = int_to_ptr.vmem [resolvable:$true] %s1329
      %s1331 = sshll.u32 %s3, 4
      %s1332 = int_to_ptr.hbm [resolvable:$true] %s1331
      %1337 = dma.vmem_to_hbm [thread:$0]  %s1330, 8192, %s1332, [#allocation5], 256, 256, 16
    $region37: #{tpu_custom_call.1} parent=1 // pred_fallthru
      _
    // Predicated region
    $region38: #{tpu_custom_call.1} parent=1 // pred_check
      _
    $region39: #{tpu_custom_call.1} parent=1 // pred_check_branch
      %1339 = sbr.rel (0) target = $region41
    $region40: #{tpu_custom_call.1} parent=1 // pred_region
      %1341 = dma.done [#allocation5], 8192
    $region41: #{tpu_custom_call.1} parent=1 // pred_fallthru
      _
    %1342 = vsyncpa [#allocation4], 1
    %1343 = vsyncpa [#allocation7], 1
    %1344 = vsyncpa [#allocation5], 1

</llo_original>
